<compile_context>
chip_gen: v5e
topology: v5e:2x2
jax: 0.10.0
libtpu: 0.0.40
codegen_flags: <defaults>
</compile_context>

<pallas_src>
import functools
import math

import jax
import jax.numpy as jnp
from jax.experimental import pallas as pl
from jax.experimental.pallas import tpu as pltpu


def _round_up(x: int, m: int) -> int:
    return (x + m - 1) // m * m


def _center_loss_kernel(label_ref, feat_ref, centers_ref, out_ref, acc_ref, *,
                        batch_size, tiles_per_core, scale):
    # label_ref:   (tile_b, 1)   int32  VMEM (tiled with the feature)
    # feat_ref:    (tile_b, d)   native VMEM (double-buffered tile)
    # centers_ref: (C, d)        native VMEM (resident, constant index map)
    # out_ref:     (1, 1)        f32    SMEM (per-core scaled partial sum)
    # acc_ref:     (8, d)        f32    VMEM vector accumulator
    p = pl.program_id(0)          # parallel (core) axis
    t = pl.program_id(1)          # batch-tile axis (sequential reduction)
    tile_b, d = feat_ref.shape
    num_class = centers_ref.shape[0]

    @pl.when(t == 0)
    def _init():
        acc_ref[...] = jnp.zeros_like(acc_ref)

    feat = feat_ref[...].astype(jnp.float32)              # (tile_b, d)
    cent = centers_ref[...].astype(jnp.float32)           # (C, d), tiny
    lab = label_ref[...]                                   # (tile_b, 1) int32

    # Vectorized gather: centers[label] as a num_class-way select (VPU only).
    # Note: out-of-range labels select nothing -> zeros (PyTorch would raise).
    gathered = jnp.zeros_like(feat)
    for c in range(num_class):                             # unrolled, C is small
        gathered = jnp.where(lab == c, cent[c][None, :], gathered)

    diff = feat - gathered

    def row_group_sum(x):
        # (tile_b, d) -> (8, d): sum groups of 8 rows.  The reshape only splits
        # the leading (sublane-group) dim, so this is pure vreg VPU adds.
        return x.reshape(tile_b // 8, 8, d).sum(axis=0)

    g = p * tiles_per_core + t                             # global tile index
    base = g * tile_b

    @pl.when(base + tile_b <= batch_size)                  # fully valid tile
    def _full_tile():
        acc_ref[...] += row_group_sum(diff * diff)

    @pl.when(base + tile_b > batch_size)                   # ragged / overflow
    def _ragged_tile():
        row = base + jax.lax.broadcasted_iota(jnp.int32, (tile_b, d), 0)
        masked = jnp.where(row < batch_size, diff, 0.0)
        acc_ref[...] += row_group_sum(masked * masked)

    @pl.when(t == pl.num_programs(1) - 1)
    def _finalize():
        out_ref[0, 0] = jnp.sum(acc_ref[...]) * scale


def center_loss(feature, label, centers, size_average=True, tile_b=None):
    """Pallas TPU implementation of CenterLossFunction.forward."""
    batch_size = int(feature.shape[0])
    feature = feature.reshape(batch_size, -1)
    feat_dim = int(feature.shape[1])
    num_class = int(centers.shape[0])
    if feat_dim != centers.shape[1]:
        raise ValueError(
            f"Center's dim: {centers.shape[1]} should be equal to input "
            f"feature's dim: {feat_dim}")

    labels = label.astype(jnp.int32).reshape(batch_size, 1)

    # Batch tile: multiple of 8 sublanes; the double-buffered feature tile is
    # kept under ~12 MiB (fits v5e's 16 MiB default scoped VMEM with headroom,
    # well under v7x's 64 MiB physical ceiling even with both cores active).
    if tile_b is None:
        tile_b = min(1024, _round_up(batch_size, 8))
        bytes_per_row = 2 * feat_dim * feature.dtype.itemsize  # double buffer
        while tile_b > 8 and tile_b * bytes_per_row > 12 * 1024 * 1024:
            tile_b //= 2
    tile_b = max(8, _round_up(int(tile_b), 8))

    total_tiles = pl.cdiv(batch_size, tile_b)
    n_par = 2 if total_tiles >= 2 else 1        # engage both TensorCores on v7x
    tiles_per_core = pl.cdiv(total_tiles, n_par)

    scale = 0.5 / float(batch_size if size_average else 1)
    kernel = functools.partial(_center_loss_kernel, batch_size=batch_size,
                               tiles_per_core=tiles_per_core, scale=scale)

    def tile_map(p, t):
        # Clamp so an overflow tile (odd tile count split across cores) re-reads
        # the last real tile instead of DMA'ing fully out of bounds; its rows
        # are masked out in the kernel.
        return (jnp.minimum(p * tiles_per_core + t, total_tiles - 1), 0)

    grid_spec = pltpu.PrefetchScalarGridSpec(
        num_scalar_prefetch=0,
        grid=(n_par, tiles_per_core),
        in_specs=[
            pl.BlockSpec((tile_b, 1), tile_map),                        # labels
            pl.BlockSpec((tile_b, feat_dim), tile_map),                 # feature
            pl.BlockSpec((num_class, feat_dim), lambda p, t: (0, 0)),   # centers
        ],
        out_specs=pl.BlockSpec((1, 1), lambda p, t: (p, 0),
                               memory_space=pltpu.SMEM),
        scratch_shapes=[
            pltpu.VMEM((8, feat_dim), jnp.float32),     # vector loss accumulator
        ],
    )
    out = pl.pallas_call(
        kernel,
        out_shape=jax.ShapeDtypeStruct((n_par, 1), jnp.float32),
        grid_spec=grid_spec,
        compiler_params=pltpu.CompilerParams(
            dimension_semantics=("parallel", "arbitrary"),
            vmem_limit_bytes=32 * 1024 * 1024),
    )(labels, feature, centers)
    # Per-core partials are already scaled; a single scalar add combines them.
    return jnp.sum(out)


def init_centers(key, num_class, feat_dim, gain=math.sqrt(2.0)):
    # Xavier-uniform init, matching nn.init.xavier_uniform_(gain=sqrt(2)).
    bound = gain * math.sqrt(6.0 / (num_class + feat_dim))
    return jax.random.uniform(key, (num_class, feat_dim), jnp.float32,
                              minval=-bound, maxval=bound)


if __name__ == "__main__":
    num_class = 7
    key = jax.random.PRNGKey(0)
    k_f1, k_l1, k_c1, k_f2, k_l2, k_f3, k_l3 = jax.random.split(key, 7)

    # Case 1: small NCHW feature map (B=4, 2x16x16 -> feat_dim=512), f32,
    # single ragged tile (B < tile_b) -> exercises the masked boundary path.
    B1, C_in, H, W = 4, 2, 16, 16
    feat_dim1 = C_in * H * W
    x1 = jax.random.normal(k_f1, (B1, C_in, H, W), dtype=jnp.float32)
    l1 = jax.random.randint(k_l1, (B1,), 0, num_class, dtype=jnp.int32)
    c1 = init_centers(k_c1, num_class, feat_dim1)
    loss1 = jax.block_until_ready(center_loss(x1, l1, c1, size_average=True))
    ref1 = jnp.sum((x1.reshape(B1, -1) - c1[l1]) ** 2) / 2.0 / B1
    assert jnp.allclose(loss1, ref1, rtol=1e-5, atol=1e-5), (loss1, ref1)

    # Case 2: multi-tile, batch divisible by tile; both halves of the parallel
    # axis do real work (f32, feat_dim=512).
    B2 = 32
    x2 = jax.random.normal(k_f2, (B2, feat_dim1), dtype=jnp.float32)
    l2 = jax.random.randint(k_l2, (B2,), 0, num_class, dtype=jnp.int32)
    loss2 = jax.block_until_ready(center_loss(x2, l2, c1, tile_b=8))
    ref2 = jnp.sum((x2 - c1[l2]) ** 2) / 2.0 / B2
    assert jnp.allclose(loss2, ref2, rtol=1e-5, atol=1e-5), (loss2, ref2)

    # Case 3: bf16 inputs, ragged batch (20 rows over 8-row tiles -> odd tile
    # count hits the clamp + mask paths) and a non-128-multiple feat_dim (96).
    B3, feat_dim3 = 20, 96
    x3 = jax.random.normal(k_f3, (B3, feat_dim3),
                           dtype=jnp.float32).astype(jnp.bfloat16)
    l3 = jax.random.randint(k_l3, (B3,), 0, num_class, dtype=jnp.int32)
    c3 = init_centers(k_c1, num_class, feat_dim3).astype(jnp.bfloat16)
    loss3 = jax.block_until_ready(center_loss(x3, l3, c3, tile_b=8))
    ref3 = jnp.sum((x3.astype(jnp.float32)
                    - c3.astype(jnp.float32)[l3]) ** 2) / 2.0 / B3
    assert jnp.allclose(loss3, ref3, rtol=1e-3, atol=1e-3), (loss3, ref3)

    print("KERNEL_OK")
</pallas_src>

<mosaic_0001>
module attributes {stable_mosaic.version = 11 : i64} {
  func.func @_center_loss_kernel(%arg0: i32, %arg1: i32, %arg2: memref<8x1xi32, #tpu.memory_space<vmem>>, %arg3: memref<8x512xf32, #tpu.memory_space<vmem>>, %arg4: memref<7x512xf32, #tpu.memory_space<vmem>>, %arg5: memref<1x1xf32, #tpu.memory_space<smem>>, %arg6: memref<8x512xf32, #tpu.memory_space<vmem>>) attributes {dimension_semantics = [#tpu.dimension_semantics<parallel>, #tpu.dimension_semantics<arbitrary>], iteration_bounds = array<i64: 1, 1>, scalar_prefetch = 0 : i64, scratch_operands = 1 : i64, tpu.core_type = #tpu.core_type<tc>, window_params = [{transform_indices = @transform_0, window_bounds = array<i64: 8, 1>}, {transform_indices = @transform_1, window_bounds = array<i64: 8, 512>}, {pipeline_mode = #tpu.pipeline_mode<synchronous>, transform_indices = @transform_2, window_bounds = array<i64: 7, 512>}, {transform_indices = @transform_3, window_bounds = array<i64: 1, 1>}]} {
    %c0_i32 = arith.constant 0 : i32
    %0 = arith.cmpi eq, %arg1, %c0_i32 : i32
    %1 = arith.extui %0 : i1 to i32
    %c0_i32_0 = arith.constant 0 : i32
    %2 = arith.cmpi ne, %1, %c0_i32_0 : i32
    scf.if %2 {
      %cst_16 = arith.constant 0.000000e+00 : f32
      %92 = vector.broadcast %cst_16 : f32 to vector<8x512xf32>
      %c0_17 = arith.constant 0 : index
      %c0_18 = arith.constant 0 : index
      %93 = vector.load %arg6[%c0_17, %c0_18] : memref<8x512xf32, #tpu.memory_space<vmem>>, vector<8x512xf32>
      tpu.vector_store %arg6[%c0_17, %c0_18], %92 {strides = array<i32>} : memref<8x512xf32, #tpu.memory_space<vmem>>, vector<8x512xf32>,
    } else {
    }
    %c0 = arith.constant 0 : index
    %c0_1 = arith.constant 0 : index
    %3 = vector.load %arg3[%c0, %c0_1] : memref<8x512xf32, #tpu.memory_space<vmem>>, vector<8x512xf32>
    %c0_2 = arith.constant 0 : index
    %c0_3 = arith.constant 0 : index
    %4 = vector.load %arg4[%c0_2, %c0_3] : memref<7x512xf32, #tpu.memory_space<vmem>>, vector<7x512xf32>
    %c0_4 = arith.constant 0 : index
    %c0_5 = arith.constant 0 : index
    %5 = vector.load %arg2[%c0_4, %c0_5] : memref<8x1xi32, #tpu.memory_space<vmem>>, vector<8x1xi32>
    %cst = arith.constant 0.000000e+00 : f32
    %6 = vector.broadcast %cst : f32 to vector<8x512xf32>
    %c0_i32_6 = arith.constant 0 : i32
    %7 = vector.broadcast %c0_i32_6 : i32 to vector<8x1xi32>
    %8 = arith.cmpi eq, %5, %7 : vector<8x1xi32>
    %9 = vector.extract_strided_slice %4 {offsets = [0, 0], sizes = [1, 512], strides = [1, 1]} : vector<7x512xf32> to vector<1x512xf32>
    %10 = vector.shape_cast %9 : vector<1x512xf32> to vector<512xf32>
    %11 = vector.shape_cast %10 : vector<512xf32> to vector<1x512xf32>
    %12 = vector.shape_cast %8 : vector<8x1xi1> to vector<8x1xi1>
    %13 = vector.broadcast %12 : vector<8x1xi1> to vector<8x512xi1>
    %14 = vector.shape_cast %11 : vector<1x512xf32> to vector<1x512xf32>
    %15 = vector.broadcast %14 : vector<1x512xf32> to vector<8x512xf32>
    %16 = arith.select %13, %15, %6 : vector<8x512xi1>, vector<8x512xf32>
    %c1_i32 = arith.constant 1 : i32
    %17 = vector.broadcast %c1_i32 : i32 to vector<8x1xi32>
    %18 = arith.cmpi eq, %5, %17 : vector<8x1xi32>
    %19 = vector.extract_strided_slice %4 {offsets = [1, 0], sizes = [1, 512], strides = [1, 1]} : vector<7x512xf32> to vector<1x512xf32>
    %20 = vector.shape_cast %19 : vector<1x512xf32> to vector<512xf32>
    %21 = vector.shape_cast %20 : vector<512xf32> to vector<1x512xf32>
    %22 = vector.shape_cast %18 : vector<8x1xi1> to vector<8x1xi1>
    %23 = vector.broadcast %22 : vector<8x1xi1> to vector<8x512xi1>
    %24 = vector.shape_cast %21 : vector<1x512xf32> to vector<1x512xf32>
    %25 = vector.broadcast %24 : vector<1x512xf32> to vector<8x512xf32>
    %26 = arith.select %23, %25, %16 : vector<8x512xi1>, vector<8x512xf32>
    %c2_i32 = arith.constant 2 : i32
    %27 = vector.broadcast %c2_i32 : i32 to vector<8x1xi32>
    %28 = arith.cmpi eq, %5, %27 : vector<8x1xi32>
    %29 = vector.extract_strided_slice %4 {offsets = [2, 0], sizes = [1, 512], strides = [1, 1]} : vector<7x512xf32> to vector<1x512xf32>
    %30 = vector.shape_cast %29 : vector<1x512xf32> to vector<512xf32>
    %31 = vector.shape_cast %30 : vector<512xf32> to vector<1x512xf32>
    %32 = vector.shape_cast %28 : vector<8x1xi1> to vector<8x1xi1>
    %33 = vector.broadcast %32 : vector<8x1xi1> to vector<8x512xi1>
    %34 = vector.shape_cast %31 : vector<1x512xf32> to vector<1x512xf32>
    %35 = vector.broadcast %34 : vector<1x512xf32> to vector<8x512xf32>
    %36 = arith.select %33, %35, %26 : vector<8x512xi1>, vector<8x512xf32>
    %c3_i32 = arith.constant 3 : i32
    %37 = vector.broadcast %c3_i32 : i32 to vector<8x1xi32>
    %38 = arith.cmpi eq, %5, %37 : vector<8x1xi32>
    %39 = vector.extract_strided_slice %4 {offsets = [3, 0], sizes = [1, 512], strides = [1, 1]} : vector<7x512xf32> to vector<1x512xf32>
    %40 = vector.shape_cast %39 : vector<1x512xf32> to vector<512xf32>
    %41 = vector.shape_cast %40 : vector<512xf32> to vector<1x512xf32>
    %42 = vector.shape_cast %38 : vector<8x1xi1> to vector<8x1xi1>
    %43 = vector.broadcast %42 : vector<8x1xi1> to vector<8x512xi1>
    %44 = vector.shape_cast %41 : vector<1x512xf32> to vector<1x512xf32>
    %45 = vector.broadcast %44 : vector<1x512xf32> to vector<8x512xf32>
    %46 = arith.select %43, %45, %36 : vector<8x512xi1>, vector<8x512xf32>
    %c4_i32 = arith.constant 4 : i32
    %47 = vector.broadcast %c4_i32 : i32 to vector<8x1xi32>
    %48 = arith.cmpi eq, %5, %47 : vector<8x1xi32>
    %49 = vector.extract_strided_slice %4 {offsets = [4, 0], sizes = [1, 512], strides = [1, 1]} : vector<7x512xf32> to vector<1x512xf32>
    %50 = vector.shape_cast %49 : vector<1x512xf32> to vector<512xf32>
    %51 = vector.shape_cast %50 : vector<512xf32> to vector<1x512xf32>
    %52 = vector.shape_cast %48 : vector<8x1xi1> to vector<8x1xi1>
    %53 = vector.broadcast %52 : vector<8x1xi1> to vector<8x512xi1>
    %54 = vector.shape_cast %51 : vector<1x512xf32> to vector<1x512xf32>
    %55 = vector.broadcast %54 : vector<1x512xf32> to vector<8x512xf32>
    %56 = arith.select %53, %55, %46 : vector<8x512xi1>, vector<8x512xf32>
    %c5_i32 = arith.constant 5 : i32
    %57 = vector.broadcast %c5_i32 : i32 to vector<8x1xi32>
    %58 = arith.cmpi eq, %5, %57 : vector<8x1xi32>
    %59 = vector.extract_strided_slice %4 {offsets = [5, 0], sizes = [1, 512], strides = [1, 1]} : vector<7x512xf32> to vector<1x512xf32>
    %60 = vector.shape_cast %59 : vector<1x512xf32> to vector<512xf32>
    %61 = vector.shape_cast %60 : vector<512xf32> to vector<1x512xf32>
    %62 = vector.shape_cast %58 : vector<8x1xi1> to vector<8x1xi1>
    %63 = vector.broadcast %62 : vector<8x1xi1> to vector<8x512xi1>
    %64 = vector.shape_cast %61 : vector<1x512xf32> to vector<1x512xf32>
    %65 = vector.broadcast %64 : vector<1x512xf32> to vector<8x512xf32>
    %66 = arith.select %63, %65, %56 : vector<8x512xi1>, vector<8x512xf32>
    %c6_i32 = arith.constant 6 : i32
    %67 = vector.broadcast %c6_i32 : i32 to vector<8x1xi32>
    %68 = arith.cmpi eq, %5, %67 : vector<8x1xi32>
    %69 = vector.extract_strided_slice %4 {offsets = [6, 0], sizes = [1, 512], strides = [1, 1]} : vector<7x512xf32> to vector<1x512xf32>
    %70 = vector.shape_cast %69 : vector<1x512xf32> to vector<512xf32>
    %71 = vector.shape_cast %70 : vector<512xf32> to vector<1x512xf32>
    %72 = vector.shape_cast %68 : vector<8x1xi1> to vector<8x1xi1>
    %73 = vector.broadcast %72 : vector<8x1xi1> to vector<8x512xi1>
    %74 = vector.shape_cast %71 : vector<1x512xf32> to vector<1x512xf32>
    %75 = vector.broadcast %74 : vector<1x512xf32> to vector<8x512xf32>
    %76 = arith.select %73, %75, %66 : vector<8x512xi1>, vector<8x512xf32>
    %77 = arith.subf %3, %76 : vector<8x512xf32>
    %c1_i32_7 = arith.constant 1 : i32
    %78 = arith.muli %arg0, %c1_i32_7 : i32
    %79 = arith.addi %78, %arg1 : i32
    %c8_i32 = arith.constant 8 : i32
    %80 = arith.muli %79, %c8_i32 : i32
    %c8_i32_8 = arith.constant 8 : i32
    %81 = arith.addi %80, %c8_i32_8 : i32
    %c4_i32_9 = arith.constant 4 : i32
    %82 = arith.cmpi sle, %81, %c4_i32_9 : i32
    %83 = arith.extui %82 : i1 to i32
    %c0_i32_10 = arith.constant 0 : i32
    %84 = arith.cmpi ne, %83, %c0_i32_10 : i32
    scf.if %84 {
      %c0_16 = arith.constant 0 : index
      %c0_17 = arith.constant 0 : index
      %92 = vector.load %arg6[%c0_16, %c0_17] : memref<8x512xf32, #tpu.memory_space<vmem>>, vector<8x512xf32>
      %93 = arith.mulf %77, %77 : vector<8x512xf32>
      %94 = vector.shape_cast %93 : vector<8x512xf32> to vector<1x8x512xf32>
      %cst_18 = arith.constant dense<0.000000e+00> : vector<8x512xf32>
      %95 = vector.multi_reduction <add>, %94, %cst_18 [0] : vector<1x8x512xf32> to vector<8x512xf32>
      %96 = arith.addf %92, %95 : vector<8x512xf32>
      %c0_19 = arith.constant 0 : index
      %c0_20 = arith.constant 0 : index
      %97 = vector.load %arg6[%c0_19, %c0_20] : memref<8x512xf32, #tpu.memory_space<vmem>>, vector<8x512xf32>
      tpu.vector_store %arg6[%c0_19, %c0_20], %96 {strides = array<i32>} : memref<8x512xf32, #tpu.memory_space<vmem>>, vector<8x512xf32>,
    } else {
    }
    %c8_i32_11 = arith.constant 8 : i32
    %85 = arith.addi %80, %c8_i32_11 : i32
    %c4_i32_12 = arith.constant 4 : i32
    %86 = arith.cmpi sgt, %85, %c4_i32_12 : i32
    %87 = arith.extui %86 : i1 to i32
    %c0_i32_13 = arith.constant 0 : i32
    %88 = arith.cmpi ne, %87, %c0_i32_13 : i32
    scf.if %88 {
      %92 = tpu.iota {dimensions = array<i32: 0>} : vector<8x512xi32>
      %93 = vector.broadcast %80 : i32 to vector<8x512xi32>
      %94 = arith.addi %93, %92 : vector<8x512xi32>
      %c4_i32_16 = arith.constant 4 : i32
      %95 = vector.broadcast %c4_i32_16 : i32 to vector<8x512xi32>
      %96 = arith.cmpi slt, %94, %95 : vector<8x512xi32>
      %cst_17 = arith.constant 0.000000e+00 : f32
      %97 = vector.broadcast %cst_17 : f32 to vector<8x512xf32>
      %98 = arith.select %96, %77, %97 : vector<8x512xi1>, vector<8x512xf32>
      %c0_18 = arith.constant 0 : index
      %c0_19 = arith.constant 0 : index
      %99 = vector.load %arg6[%c0_18, %c0_19] : memref<8x512xf32, #tpu.memory_space<vmem>>, vector<8x512xf32>
      %100 = arith.mulf %98, %98 : vector<8x512xf32>
      %101 = vector.shape_cast %100 : vector<8x512xf32> to vector<1x8x512xf32>
      %cst_20 = arith.constant dense<0.000000e+00> : vector<8x512xf32>
      %102 = vector.multi_reduction <add>, %101, %cst_20 [0] : vector<1x8x512xf32> to vector<8x512xf32>
      %103 = arith.addf %99, %102 : vector<8x512xf32>
      %c0_21 = arith.constant 0 : index
      %c0_22 = arith.constant 0 : index
      %104 = vector.load %arg6[%c0_21, %c0_22] : memref<8x512xf32, #tpu.memory_space<vmem>>, vector<8x512xf32>
      tpu.vector_store %arg6[%c0_21, %c0_22], %103 {strides = array<i32>} : memref<8x512xf32, #tpu.memory_space<vmem>>, vector<8x512xf32>,
    } else {
    }
    %c0_i32_14 = arith.constant 0 : i32
    %89 = arith.cmpi eq, %arg1, %c0_i32_14 : i32
    %90 = arith.extui %89 : i1 to i32
    %c0_i32_15 = arith.constant 0 : i32
    %91 = arith.cmpi ne, %90, %c0_i32_15 : i32
    scf.if %91 {
      %c0_16 = arith.constant 0 : index
      %c0_17 = arith.constant 0 : index
      %92 = vector.load %arg6[%c0_16, %c0_17] : memref<8x512xf32, #tpu.memory_space<vmem>>, vector<8x512xf32>
      %93 = vector.shape_cast %92 : vector<8x512xf32> to vector<1x8x512xf32>
      %cst_18 = arith.constant dense<0.000000e+00> : vector<1xf32>
      %94 = vector.multi_reduction <add>, %93, %cst_18 [1, 2] : vector<1x8x512xf32> to vector<1xf32>
      %95 = vector.shape_cast %94 : vector<1xf32> to vector<1x1x1xf32>
      %96 = vector.extract %95[0, 0, 0] : f32 from vector<1x1x1xf32>
      %cst_19 = arith.constant 1.250000e-01 : f32
      %97 = arith.mulf %96, %cst_19 : f32
      %c0_20 = arith.constant 0 : index
      %c0_21 = arith.constant 0 : index
      %98 = memref.load %arg5[%c0_20, %c0_21] : memref<1x1xf32, #tpu.memory_space<smem>>
      memref.store %97, %arg5[%c0_20, %c0_21] : memref<1x1xf32, #tpu.memory_space<smem>>
    } else {
    }
    return
  }
  func.func @transform_0(%arg0: i32, %arg1: i32) -> (i32, i32) {
    %c1_i32 = arith.constant 1 : i32
    %0 = arith.muli %arg0, %c1_i32 : i32
    %1 = arith.addi %0, %arg1 : i32
    %c0_i32 = arith.constant 0 : i32
    %2 = arith.minsi %1, %c0_i32 : i32
    %c0_i32_0 = arith.constant 0 : i32
    %c0_i32_1 = arith.constant 0 : i32
    return %2, %c0_i32_0 : i32, i32
  }
  func.func @transform_1(%arg0: i32, %arg1: i32) -> (i32, i32) {
    %c1_i32 = arith.constant 1 : i32
    %0 = arith.muli %arg0, %c1_i32 : i32
    %1 = arith.addi %0, %arg1 : i32
    %c0_i32 = arith.constant 0 : i32
    %2 = arith.minsi %1, %c0_i32 : i32
    %c0_i32_0 = arith.constant 0 : i32
    %c0_i32_1 = arith.constant 0 : i32
    return %2, %c0_i32_0 : i32, i32
  }
  func.func @transform_2(%arg0: i32, %arg1: i32) -> (i32, i32) {
    %c0_i32 = arith.constant 0 : i32
    %c0_i32_0 = arith.constant 0 : i32
    %c0_i32_1 = arith.constant 0 : i32
    return %c0_i32, %c0_i32_0 : i32, i32
  }
  func.func @transform_3(%arg0: i32, %arg1: i32) -> (i32, i32) {
    %c0_i32 = arith.constant 0 : i32
    %c0_i32_0 = arith.constant 0 : i32
    return %arg0, %c0_i32 : i32, i32
  }
}

</mosaic_0001>

<llo_original>
// kernel: tpu_custom_call.1
$region0: #{tpu_custom_call.1}
  #allocation0 [shape = 'u32[]', space=smem, size = 0x4, offset = 0x4, fixed_abs, tag = 'smem constant byte address 0x4 - core index']
  #allocation1 [shape = 'u32[72,128]{1,0:T(1,128)}', space=vmem, size = 0x9000, scoped, tag = 'internal scratch']
  #allocation2 [shape = 'f32[8,512]{1,0:T(8,128)}', space=vmem, size = 0x4000, scoped, tag = 'scratch operand']
  %s0 = inlined_call_operand.vmem [shape: s32[4,1], index: 0, kind: input, shape index: {}]
  %s1 = inlined_call_operand.hbm [shape: f32[4,512], index: 1, kind: input, shape index: {}]
  %s2 = inlined_call_operand.hbm [shape: f32[7,512], index: 2, kind: input, shape index: {}]
  %s3 = inlined_call_operand.hbm [shape: f32[1,1], index: 3, kind: output, shape index: {}]
  %s4 = sld [smem:[#allocation0]]
  $region46: #{tpu_custom_call.1} parent=0
    _
  %s6 = ssub.s32 1, %s4
  %s7 = scalar_select 0, %s6, %s4
  $region1: #{tpu_custom_call.1} parent=0
    #allocation3 [shape = 'u8[16384]{0}', space=vmem, size = 0x4000, scoped, tag = 'input window, operand 1, single buffered']
    #allocation4 [shape = 's32[1]{0}', space=sflag, size = 0x4, scoped, tag = 'scoped memory for tpu_custom_call.1']
    #allocation5 [shape = 's32[1]{0}', space=sflag, size = 0x4, scoped, tag = 'scoped memory for tpu_custom_call.1']
    #allocation6 [shape = 'u8[16384]{0}', space=vmem, size = 0x4000, scoped, tag = 'input window, operand 2, single buffered']
    #allocation7 [shape = 's32[1]{0}', space=sflag, size = 0x4, scoped, tag = 'scoped memory for tpu_custom_call.1']
    #allocation8 [shape = 'u8[512]{0}', space=smem, size = 0x200, scoped, tag = 'output window, operand 0, single buffered']
    %8 = vsyncpa [#allocation4], 0
    %9 = vsyncpa [#allocation7], 0
    %10 = vsyncpa [#allocation5], 0
    // Predicated region
    $region2: #{tpu_custom_call.1} parent=1 // pred_check
      _
    $region3: #{tpu_custom_call.1} parent=1 // pred_check_branch
      %12 = sbr.rel (0) target = $region5
    $region4: #{tpu_custom_call.1} parent=1 // pred_region
      %s13 = sadd.s32 0, 0
      %p14 = scmp.lt.s32.totalorder %s13, 0
      %s15 = scalar_select %p14, %s13, 0
      %s16 = smul.u32 2, %s15
      %s17 = ssub.s32 1, %s16
      %s18 = smul.u32 4, %s17
      %p19 = scmp.lt.s32.totalorder %s16, 0
      %s20 = scalar_select %p19, %s16, 0
      %s21 = smul.addr %s20, 4
      %s22 = scalar_lea.vmem %s0, %s21
      %s23 = sadd.s32 0, 0
      %p24 = scmp.lt.s32.totalorder %s23, 0
      %s25 = scalar_select %p24, %s23, 0
      %s26 = smul.u32 2, %s25
      %s27 = ssub.s32 1, %s26
      %s28 = smul.u32 4, %s27
    $region5: #{tpu_custom_call.1} parent=1 // pred_fallthru
      _
    // Predicated region
    $region6: #{tpu_custom_call.1} parent=1 // pred_check
      _
    $region7: #{tpu_custom_call.1} parent=1 // pred_check_branch
      %30 = sbr.rel (0) target = $region9
    $region8: #{tpu_custom_call.1} parent=1 // pred_region
      %s31 = sadd.s32 0, 0
      %p32 = scmp.lt.s32.totalorder %s31, 0
      %s33 = scalar_select %p32, %s31, 0
      %s34 = smul.u32 2, %s33
      %s35 = ssub.s32 1, %s34
      %s36 = smul.u32 4, %s35
      %s37 = smul.u32 %s36, 4
      %s38 = ssub.s32 32, %s37
      %s39 = sshll.u32 %s38, 4
      %40 = vsyncadd [#allocation4], %s39
      %p41 = scmp.ne.s32.totalorder 0, %s37
      %s42 = smul.addr %s34, 4
      %s43 = smul.addr %s42, 4
      %s44 = scalar_lea.hbm %s1, %s43
      %s45 = smul.u32 16, %s35
      %s46 = sshll.u32 %s44, 4
      %s47 = int_to_ptr.hbm [resolvable:$true] %s46
      %s48 = sshll.u32 [#allocation3], 4
      %s49 = int_to_ptr.vmem [resolvable:$true] %s48
      %s50 = sshll.u32 %s45, 4
      %54 = dma.hbm_to_vmem [thread:$0]  (%p41), %s47, %s50, %s49, [#allocation4], 256, 256, 16
    $region9: #{tpu_custom_call.1} parent=1 // pred_fallthru
      _
    // Predicated region
    $region10: #{tpu_custom_call.1} parent=1 // pred_check
      _
    $region11: #{tpu_custom_call.1} parent=1 // pred_check_branch
      %56 = sbr.rel (0) target = $region13
    $region12: #{tpu_custom_call.1} parent=1 // pred_region
      %58 = vsyncadd [#allocation7], 0
      %s60 = sshll.u32 %s2, 4
      %s61 = int_to_ptr.hbm [resolvable:$true] %s60
      %s62 = sshll.u32 [#allocation6], 4
      %s63 = int_to_ptr.vmem [resolvable:$true] %s62
      %65 = dma.hbm_to_vmem [thread:$0]  %s61, 512, %s63, [#allocation7]
    $region13: #{tpu_custom_call.1} parent=1 // pred_fallthru
      _
    // Predicated region
    $region14: #{tpu_custom_call.1} parent=1 // pred_check
      _
    $region15: #{tpu_custom_call.1} parent=1 // pred_check_branch
      %67 = sbr.rel (0) target = $region17
    $region16: #{tpu_custom_call.1} parent=1 // pred_region
      %69 = dma.done [#allocation4], 512
    $region17: #{tpu_custom_call.1} parent=1 // pred_fallthru
      _
    // Predicated region
    $region18: #{tpu_custom_call.1} parent=1 // pred_check
      _
    $region19: #{tpu_custom_call.1} parent=1 // pred_check_branch
      %71 = sbr.rel (0) target = $region21
    $region20: #{tpu_custom_call.1} parent=1 // pred_region
      %73 = dma.done [#allocation7], 512
    $region21: #{tpu_custom_call.1} parent=1 // pred_fallthru
      _
    %s74 = sadd.s32 0, 0
    %p75 = scmp.lt.s32.totalorder %s74, 0
    %s76 = scalar_select %p75, %s74, 0
    %s77 = smul.u32 2, %s76
    %s78 = ssub.s32 1, %s77
    %s79 = smul.u32 4, %s78
    %p80 = scmp.lt.s32.totalorder %s77, 0
    %s81 = scalar_select %p80, %s77, 0
    %s82 = smul.addr %s81, 4
    %s83 = scalar_lea.vmem %s0, %s82
    %s84 = sadd.s32 0, 0
    %p85 = scmp.lt.s32.totalorder %s84, 0
    %s86 = scalar_select %p85, %s84, 0
    %s87 = smul.u32 2, %s86
    %s88 = ssub.s32 1, %s87
    %s89 = smul.u32 4, %s88
    %p90 = scmp.lt.s32.totalorder %s87, 0
    %s91 = scalar_select %p90, %s87, 0
    %s92 = smul.addr %s91, 4
    %s93 = scalar_lea.vmem %s0, %s92
    %s94 = sadd.s32 0, 0
    %p95 = scmp.lt.s32.totalorder %s94, 0
    %s96 = scalar_select %p95, %s94, 0
    %s97 = smul.u32 2, %s96
    %s98 = ssub.s32 1, %s97
    %s99 = smul.u32 4, %s98
    %s100 = sadd.s32 0, 0
    %p101 = scmp.lt.s32.totalorder %s100, 0
    %s102 = scalar_select %p101, %s100, 0
    %s103 = smul.u32 2, %s102
    %s104 = ssub.s32 1, %s103
    %s105 = smul.u32 4, %s104
    %s106 = smul.u32 %s105, 4
    %p107 = scmp.eq.s32.totalorder 0, 0
    // Predicated region
    $region22: #{tpu_custom_call.1} parent=1 // pred_check
      %p108 = pneg %p107
    $region23: #{tpu_custom_call.1} parent=1 // pred_check_branch
      %110 = sbr.rel (%p108) target = $region25
    $region24: #{tpu_custom_call.1} parent=1 // pred_region
      %111 = vst [vmem:[#allocation2] sm:$0xff] 0.0
      %112 = vst [vmem:[#allocation2 + $0x8] sm:$0xff] 0.0
      %113 = vst [vmem:[#allocation2 + $0x10] sm:$0xff] 0.0
      %114 = vst [vmem:[#allocation2 + $0x18] sm:$0xff] 0.0
    $region25: #{tpu_custom_call.1} parent=1 // pred_fallthru
      _
    %v115 = vld [vmem:[#allocation3] sm:$0xff]
    %v116 = vld [vmem:[#allocation3 + $0x8] sm:$0xff]
    %v117 = vld [vmem:[#allocation3 + $0x10] sm:$0xff]
    %v118 = vld [vmem:[#allocation3 + $0x18] sm:$0xff]
    %v119 = vld [vmem:[#allocation6] sm:$0x7f]
    %v120 = vld [vmem:[#allocation6 + $0x8] sm:$0x7f]
    %v121 = vld [vmem:[#allocation6 + $0x10] sm:$0x7f]
    %v122 = vld [vmem:[#allocation6 + $0x18] sm:$0x7f]
    %v123 = vld [vmem:[%s93] sm:$0xff]
    %vm124 = vcmp.eq.s32.totalorder %v123, 0
    %v125 = vsel %vm124, 1, 0
    %126 = vset.pattern.permute.xlu0 0
    %127 = vperm.xlu0 %126, %v125
    %v128 = vpop.permute.xlu0 %127
    %vm129 = vcmp.eq.s32.totalorder %v128, 1
    %v130 = vperm.slane %v119, 0
    %v131 = vperm.slane %v120, 0
    %v132 = vperm.slane %v121, 0
    %v133 = vperm.slane %v122, 0
    %v134 = vsel %vm129, %v130, 0.0
    %v135 = vsel %vm129, %v131, 0.0
    %v136 = vsel %vm129, %v132, 0.0
    %v137 = vsel %vm129, %v133, 0.0
    %vm138 = vcmp.eq.s32.totalorder %v123, 1
    %v139 = vsel %vm138, 1, 0
    %140 = vset.pattern.permute.xlu0 0
    %141 = vperm.xlu0 %140, %v139
    %v142 = vpop.permute.xlu0 %141
    %vm143 = vcmp.eq.s32.totalorder %v142, 1
    %v144 = vperm.slane %v119, 1
    %v145 = vperm.slane %v120, 1
    %v146 = vperm.slane %v121, 1
    %v147 = vperm.slane %v122, 1
    %v148 = vsel %vm143, %v144, %v134
    %v149 = vsel %vm143, %v145, %v135
    %v150 = vsel %vm143, %v146, %v136
    %v151 = vsel %vm143, %v147, %v137
    %vm152 = vcmp.eq.s32.totalorder %v123, 2
    %v153 = vsel %vm152, 1, 0
    %154 = vset.pattern.permute.xlu0 0
    %155 = vperm.xlu0 %154, %v153
    %v156 = vpop.permute.xlu0 %155
    %vm157 = vcmp.eq.s32.totalorder %v156, 1
    %v158 = vperm.slane %v119, 2
    %v159 = vperm.slane %v120, 2
    %v160 = vperm.slane %v121, 2
    %v161 = vperm.slane %v122, 2
    %v162 = vsel %vm157, %v158, %v148
    %v163 = vsel %vm157, %v159, %v149
    %v164 = vsel %vm157, %v160, %v150
    %v165 = vsel %vm157, %v161, %v151
    %vm166 = vcmp.eq.s32.totalorder %v123, 3
    %v167 = vsel %vm166, 1, 0
    %168 = vset.pattern.permute.xlu0 0
    %169 = vperm.xlu0 %168, %v167
    %v170 = vpop.permute.xlu0 %169
    %vm171 = vcmp.eq.s32.totalorder %v170, 1
    %v172 = vperm.slane %v119, 3
    %v173 = vperm.slane %v120, 3
    %v174 = vperm.slane %v121, 3
    %v175 = vperm.slane %v122, 3
    %v176 = vsel %vm171, %v172, %v162
    %v177 = vsel %vm171, %v173, %v163
    %v178 = vsel %vm171, %v174, %v164
    %v179 = vsel %vm171, %v175, %v165
    %vm180 = vcmp.eq.s32.totalorder %v123, 4
    %v181 = vsel %vm180, 1, 0
    %182 = vset.pattern.permute.xlu0 0
    %183 = vperm.xlu0 %182, %v181
    %v184 = vpop.permute.xlu0 %183
    %vm185 = vcmp.eq.s32.totalorder %v184, 1
    %v186 = vperm.slane %v119, 4
    %v187 = vperm.slane %v120, 4
    %v188 = vperm.slane %v121, 4
    %v189 = vperm.slane %v122, 4
    %v190 = vsel %vm185, %v186, %v176
    %v191 = vsel %vm185, %v187, %v177
    %v192 = vsel %vm185, %v188, %v178
    %v193 = vsel %vm185, %v189, %v179
    %vm194 = vcmp.eq.s32.totalorder %v123, 5
    %v195 = vsel %vm194, 1, 0
    %196 = vset.pattern.permute.xlu0 0
    %197 = vperm.xlu0 %196, %v195
    %v198 = vpop.permute.xlu0 %197
    %vm199 = vcmp.eq.s32.totalorder %v198, 1
    %v200 = vperm.slane %v119, 5
    %v201 = vperm.slane %v120, 5
    %v202 = vperm.slane %v121, 5
    %v203 = vperm.slane %v122, 5
    %v204 = vsel %vm199, %v200, %v190
    %v205 = vsel %vm199, %v201, %v191
    %v206 = vsel %vm199, %v202, %v192
    %v207 = vsel %vm199, %v203, %v193
    %vm208 = vcmp.eq.s32.totalorder %v123, 6
    %v209 = vsel %vm208, 1, 0
    %210 = vset.pattern.permute.xlu0 0
    %211 = vperm.xlu0 %210, %v209
    %v212 = vpop.permute.xlu0 %211
    %vm213 = vcmp.eq.s32.totalorder %v212, 1
    %v214 = vperm.slane %v119, 6
    %v215 = vperm.slane %v120, 6
    %v216 = vperm.slane %v121, 6
    %v217 = vperm.slane %v122, 6
    %v218 = vsel %vm213, %v214, %v204
    %v219 = vsel %vm213, %v215, %v205
    %v220 = vsel %vm213, %v216, %v206
    %v221 = vsel %vm213, %v217, %v207
    %v226 = vrot.slane %v219, 4
    %v227 = vrot.slane %v221, 4
    %vm228 = vcmask 1043456
    %v229 = vsel %vm228, %v218, %v226
    %v230 = vsel %vm228, %v220, %v227
    %v231 = vsel %vm228, %v226, %v218
    %v232 = vrot.slane %v231, 4
    %v233 = vsel %vm228, %v227, %v220
    %v234 = vrot.slane %v233, 4
    %v239 = vsub.f32 %v115, %v229
    %v240 = vsub.f32 %v116, %v230
    %v241 = vsub.f32 %v117, %v232
    %v242 = vsub.f32 %v118, %v234
    %s243 = sadd.s32 0, 0
    %s244 = smul.u32 %s243, 8
    %s245 = sadd.s32 %s244, 8
    %p246 = scmp.le.s32.totalorder %s245, 4
    // Predicated region
    $region26: #{tpu_custom_call.1} parent=1 // pred_check
      %p247 = pneg %p246
    $region27: #{tpu_custom_call.1} parent=1 // pred_check_branch
      %249 = sbr.rel (%p247) target = $region29
    $region28: #{tpu_custom_call.1} parent=1 // pred_region
      %v250 = vld [vmem:[#allocation2] sm:$0xff]
      %v251 = vld [vmem:[#allocation2 + $0x8] sm:$0xff]
      %v252 = vld [vmem:[#allocation2 + $0x10] sm:$0xff]
      %v253 = vld [vmem:[#allocation2 + $0x18] sm:$0xff]
      %v254 = vmul.f32 %v239, %v239
      %v255 = vmul.f32 %v240, %v240
      %v256 = vmul.f32 %v241, %v241
      %v257 = vmul.f32 %v242, %v242
      %v258 = vadd.f32 %v254, 0.0
      %v259 = vadd.f32 %v255, 0.0
      %v260 = vadd.f32 %v256, 0.0
      %v261 = vadd.f32 %v257, 0.0
      %266 = vst [vmem:[#allocation1] ss:$2 sm:$0xff] %v258
      %s267 = scalar_lea.vmem [#allocation1], 1
      %268 = vst [vmem:[%s267] ss:$2 sm:$0xff] %v260
      %s269 = scalar_lea.vmem [#allocation1], 16
      %270 = vst [vmem:[%s269] ss:$2 sm:$0xff] %v259
      %s271 = scalar_lea.vmem [#allocation1], 17
      %272 = vst [vmem:[%s271] ss:$2 sm:$0xff] %v261
      %v273 = vld.sshfl [vmem:[#allocation1] sm:$0xff pattern:$0x75316420]
      %v274 = vld.sshfl [vmem:[#allocation1 + $0x8] sm:$0xff pattern:$0x75316420]
      %v275 = vld.sshfl [vmem:[#allocation1 + $0x10] sm:$0xff pattern:$0x75316420]
      %v276 = vld.sshfl [vmem:[#allocation1 + $0x18] sm:$0xff pattern:$0x75316420]
      %v281 = vadd.f32 %v250, %v273
      %v282 = vadd.f32 %v251, %v274
      %v283 = vadd.f32 %v252, %v275
      %v284 = vadd.f32 %v253, %v276
      %285 = vst [vmem:[#allocation2] sm:$0xff] %v281
      %286 = vst [vmem:[#allocation2 + $0x8] sm:$0xff] %v282
      %287 = vst [vmem:[#allocation2 + $0x10] sm:$0xff] %v283
      %288 = vst [vmem:[#allocation2 + $0x18] sm:$0xff] %v284
    $region29: #{tpu_custom_call.1} parent=1 // pred_fallthru
      _
    %p289 = scmp.gt.s32.totalorder %s245, 4
    // Predicated region
    $region30: #{tpu_custom_call.1} parent=1 // pred_check
      %p290 = pneg %p289
    $region31: #{tpu_custom_call.1} parent=1 // pred_check_branch
      %292 = sbr.rel (%p290) target = $region33
    $region32: #{tpu_custom_call.1} parent=1 // pred_region
      %v293 = vlaneseq
      %v294 = vshrl.u32 %v293, 7
      %v295 = vstv %s244
      %v296 = vadd.s32 %v295, %v294
      %vm297 = vcmp.lt.s32.totalorder %v296, 4
      %302 = vst [vmem:[#allocation1] ss:$2 sm:$0xff] %v239
      %s303 = scalar_lea.vmem [#allocation1], 1
      %304 = vst [vmem:[%s303] ss:$2 sm:$0xff] %v241
      %s305 = scalar_lea.vmem [#allocation1], 16
      %306 = vst [vmem:[%s305] ss:$2 sm:$0xff] %v240
      %s307 = scalar_lea.vmem [#allocation1], 17
      %308 = vst [vmem:[%s307] ss:$2 sm:$0xff] %v242
      %v309 = vld.sshfl [vmem:[#allocation1] sm:$0xff pattern:$0x75316420]
      %v310 = vld.sshfl [vmem:[#allocation1 + $0x8] sm:$0xff pattern:$0x75316420]
      %v311 = vld.sshfl [vmem:[#allocation1 + $0x10] sm:$0xff pattern:$0x75316420]
      %v312 = vld.sshfl [vmem:[#allocation1 + $0x18] sm:$0xff pattern:$0x75316420]
      %v317 = vsel %vm297, %v309, 0.0
      %v318 = vsel %vm297, %v310, 0.0
      %v319 = vsel %vm297, %v311, 0.0
      %v320 = vsel %vm297, %v312, 0.0
      %v321 = vld [vmem:[#allocation2] sm:$0xff]
      %v322 = vld [vmem:[#allocation2 + $0x8] sm:$0xff]
      %v323 = vld [vmem:[#allocation2 + $0x10] sm:$0xff]
      %v324 = vld [vmem:[#allocation2 + $0x18] sm:$0xff]
      %v325 = vmul.f32 %v317, %v317
      %v326 = vmul.f32 %v318, %v318
      %v327 = vmul.f32 %v319, %v319
      %v328 = vmul.f32 %v320, %v320
      %v329 = vadd.f32 %v325, 0.0
      %v330 = vadd.f32 %v326, 0.0
      %v331 = vadd.f32 %v327, 0.0
      %v332 = vadd.f32 %v328, 0.0
      %v333 = vadd.f32 %v321, %v329
      %v334 = vadd.f32 %v322, %v330
      %v335 = vadd.f32 %v323, %v331
      %v336 = vadd.f32 %v324, %v332
      %337 = vst [vmem:[#allocation2] sm:$0xff] %v333
      %338 = vst [vmem:[#allocation2 + $0x8] sm:$0xff] %v334
      %339 = vst [vmem:[#allocation2 + $0x10] sm:$0xff] %v335
      %340 = vst [vmem:[#allocation2 + $0x18] sm:$0xff] %v336
    $region33: #{tpu_custom_call.1} parent=1 // pred_fallthru
      _
    // Predicated region
    $region34: #{tpu_custom_call.1} parent=1 // pred_check
      %p341 = pneg %p107
    $region35: #{tpu_custom_call.1} parent=1 // pred_check_branch
      %343 = sbr.rel (%p341) target = $region37
    $region36: #{tpu_custom_call.1} parent=1 // pred_region
      %v344 = vld [vmem:[#allocation2] sm:$0xff]
      %v345 = vld [vmem:[#allocation2 + $0x8] sm:$0xff]
      %v346 = vld [vmem:[#allocation2 + $0x10] sm:$0xff]
      %v347 = vld [vmem:[#allocation2 + $0x18] sm:$0xff]
      %v348 = vadd.f32 %v344, %v345
      %v349 = vadd.f32 %v348, %v346
      %v350 = vadd.f32 %v349, %v347
      %351 = vadd.xlane.f32.xlu0 %v350
      %v352 = vpop.xlane.xlu0 %351
      %v353 = vrot.slane %v352, 4
      %v354 = vadd.f32 %v352, %v353
      %v355 = vrot.slane %v354, 2
      %v356 = vadd.f32 %v354, %v355
      %v357 = vrot.slane %v356, 1
      %v358 = vadd.f32 %v356, %v357
      %s359 = vtos %v358
      %s360 = smul.f32 %s359, 0.125
      %s361 = scalar_lea.smem [#allocation8], 0
      %362 = sst [smem:[%s361]] %s360
    $region37: #{tpu_custom_call.1} parent=1 // pred_fallthru
      _
    // Predicated region
    $region38: #{tpu_custom_call.1} parent=1 // pred_check
      _
    $region39: #{tpu_custom_call.1} parent=1 // pred_check_branch
      %364 = sbr.rel (0) target = $region41
    $region40: #{tpu_custom_call.1} parent=1 // pred_region
      %366 = vsyncadd [#allocation5], 0
      %s368 = sshll.u32 %s3, 4
      %s369 = int_to_ptr.hbm [resolvable:$true] %s368
      %371 = dma.smem_to_hbm [#allocation8], 16, %s369, [#allocation5]
    $region41: #{tpu_custom_call.1} parent=1 // pred_fallthru
      _
    // Predicated region
    $region42: #{tpu_custom_call.1} parent=1 // pred_check
      _
    $region43: #{tpu_custom_call.1} parent=1 // pred_check_branch
      %373 = sbr.rel (0) target = $region45
    $region44: #{tpu_custom_call.1} parent=1 // pred_region
      %375 = dma.done [#allocation5], 16
    $region45: #{tpu_custom_call.1} parent=1 // pred_fallthru
      _
    %376 = sfence
    %377 = vsyncpa [#allocation4], 1
    %378 = vsyncpa [#allocation7], 1
    %379 = vsyncpa [#allocation5], 1

</llo_original>
